<compile_context>
chip_gen: v6e
topology: v6e:2x2x1
jax: 0.10.0
libtpu: 0.0.40
codegen_flags: <defaults>
</compile_context>

<pallas_src>
import jax
import jax.numpy as jnp
from jax.experimental import pallas as pl
from jax.experimental.pallas import tpu as pltpu


def _ceil_div(a, b):
    return -(-a // b)


def _round_up(a, m):
    return _ceil_div(a, m) * m


def _plan_tiles(D1, D2, max_tile):
    """Pick a common grid length K and lane-dense tile widths for both inputs."""
    K = max(_ceil_div(_round_up(D1, 128), max_tile),
            _ceil_div(_round_up(D2, 128), max_tile),
            1)
    tk1 = _round_up(_ceil_div(D1, K), 128)
    tk2 = _round_up(_ceil_div(D2, K), 128)
    return K, tk1, tk2


def _make_kernel(B, inv_count, eps):
    def kernel(x1_ref, x2_ref, o_ref, g1_acc, g2_acc):
        k = pl.program_id(0)

        @pl.when(k == 0)
        def _init():
            g1_acc[...] = jnp.zeros_like(g1_acc)
            g2_acc[...] = jnp.zeros_like(g2_acc)

        # Batch-center each tile (centering is per-column, so feature-dim tiling
        # is exact) and accumulate the (B, B) Gram matrices of the centered rows.
        x1 = x1_ref[...].astype(jnp.float32)
        xc1 = x1 - jnp.mean(x1, axis=0, keepdims=True)
        g1_acc[...] += jax.lax.dot_general(
            xc1, xc1, dimension_numbers=(((1,), (1,)), ((), ())),
            preferred_element_type=jnp.float32)

        x2 = x2_ref[...].astype(jnp.float32)
        xc2 = x2 - jnp.mean(x2, axis=0, keepdims=True)
        g2_acc[...] += jax.lax.dot_general(
            xc2, xc2, dimension_numbers=(((1,), (1,)), ((), ())),
            preferred_element_type=jnp.float32)

        @pl.when(k == pl.num_programs(0) - 1)
        def _finalize():
            g1 = g1_acc[...]
            g2 = g2_acc[...]
            # Diagonal (row-norm^2) extraction via an eye mask -> (B,1) and
            # (1,B) factors, avoiding any in-kernel transpose.
            row = jax.lax.broadcasted_iota(jnp.int32, (B, B), 0)
            col = jax.lax.broadcasted_iota(jnp.int32, (B, B), 1)
            eye = (row == col).astype(jnp.float32)
            d1r = jnp.sum(g1 * eye, axis=1, keepdims=True)   # (B, 1)
            d1c = jnp.sum(g1 * eye, axis=0, keepdims=True)   # (1, B)
            d2r = jnp.sum(g2 * eye, axis=1, keepdims=True)
            d2c = jnp.sum(g2 * eye, axis=0, keepdims=True)
            s1 = (jnp.sqrt(d1r) + eps) * (jnp.sqrt(d1c) + eps)   # (B, B)
            s2 = (jnp.sqrt(d2r) + eps) * (jnp.sqrt(d2c) + eps)
            prod = (g1 / s1) * (g2 / s2)
            total = jnp.sum(jnp.sum(prod, axis=1, keepdims=True),
                            axis=0, keepdims=True)               # (1, 1)
            o_ref[...] = total * inv_count

    return kernel


def orth_loss(input1, input2, *, max_tile=8192):
    """Pallas implementation of OrthLoss.forward(input1, input2)."""
    B = input1.shape[0]
    x1 = input1.reshape(B, -1).astype(jnp.float32)
    x2 = input2.reshape(B, -1).astype(jnp.float32)
    D1, D2 = x1.shape[1], x2.shape[1]

    K, tk1, tk2 = _plan_tiles(D1, D2, max_tile)
    Dp1, Dp2 = K * tk1, K * tk2
    # Zero-padded columns are exactly neutral: their batch mean is 0, their
    # centered value is 0, and they contribute 0 to the Gram matrices.
    if Dp1 != D1:
        x1 = jnp.pad(x1, ((0, 0), (0, Dp1 - D1)))
    if Dp2 != D2:
        x2 = jnp.pad(x2, ((0, 0), (0, Dp2 - D2)))

    inv_count = 1.0 / float(D1 * D2)

    out = pl.pallas_call(
        _make_kernel(B, inv_count, 1e-6),
        out_shape=jax.ShapeDtypeStruct((1, 1), jnp.float32),
        grid_spec=pltpu.PrefetchScalarGridSpec(
            num_scalar_prefetch=0,
            grid=(K,),
            in_specs=[pl.BlockSpec((B, tk1), lambda k: (0, k)),
                      pl.BlockSpec((B, tk2), lambda k: (0, k))],
            out_specs=pl.BlockSpec((1, 1), lambda k: (0, 0)),
            scratch_shapes=[pltpu.VMEM((B, B), jnp.float32),
                            pltpu.VMEM((B, B), jnp.float32)],
        ),
        compiler_params=pltpu.CompilerParams(
            dimension_semantics=("arbitrary",)),
    )(x1, x2)
    return out[0, 0]


# ---------------------------------------------------------------------------
# Pure-JAX reference (mirrors the PyTorch forward exactly).
# ---------------------------------------------------------------------------
def orth_loss_ref(input1, input2):
    B = input1.shape[0]
    x1 = input1.reshape(B, -1).astype(jnp.float32)
    x2 = input2.reshape(B, -1).astype(jnp.float32)
    x1 = x1 - jnp.mean(x1, axis=0, keepdims=True)
    x2 = x2 - jnp.mean(x2, axis=0, keepdims=True)
    x1 = x1 / (jnp.linalg.norm(x1, axis=1, keepdims=True) + 1e-6)
    x2 = x2 / (jnp.linalg.norm(x2, axis=1, keepdims=True) + 1e-6)
    return jnp.mean((x1.T @ x2) ** 2)


if __name__ == "__main__":
    key = jax.random.PRNGKey(0)
    k1, k2 = jax.random.split(key)

    # OrthLoss has no parameters; only two activation tensors as inputs.
    # Flattened feature dims differ: D1 = 4*16*16 = 1024, D2 = 2*16*16 = 512.
    input1 = jax.random.normal(k1, (2, 4, 16, 16), dtype=jnp.float32)
    input2 = jax.random.normal(k2, (2, 2, 16, 16), dtype=jnp.float32)

    ref = jax.block_until_ready(orth_loss_ref(input1, input2))
    tol = 1e-7 + 5e-4 * abs(float(ref))

    # Default path: single grid step, everything fused in one kernel invocation.
    loss = jax.block_until_ready(orth_loss(input1, input2))
    assert bool(jnp.isfinite(loss)), "non-finite loss"
    assert abs(float(loss) - float(ref)) <= tol, (float(loss), float(ref))

    # Small-tile path: forces K > 1 to exercise the tiled Gram accumulation.
    loss_tiled = jax.block_until_ready(orth_loss(input1, input2, max_tile=256))
    assert bool(jnp.isfinite(loss_tiled)), "non-finite loss (tiled)"
    assert abs(float(loss_tiled) - float(ref)) <= tol, (float(loss_tiled), float(ref))

    print("KERNEL_OK")
</pallas_src>

<mosaic_0001>
module attributes {stable_mosaic.version = 11 : i64} {
  func.func @kernel(%arg0: i32, %arg1: memref<2x1024xf32, #tpu.memory_space<vmem>>, %arg2: memref<2x512xf32, #tpu.memory_space<vmem>>, %arg3: memref<1x1xf32, #tpu.memory_space<vmem>>, %arg4: memref<2x2xf32, #tpu.memory_space<vmem>>, %arg5: memref<2x2xf32, #tpu.memory_space<vmem>>) attributes {dimension_semantics = [#tpu.dimension_semantics<arbitrary>], iteration_bounds = array<i64: 1>, scalar_prefetch = 0 : i64, scratch_operands = 2 : i64, tpu.core_type = #tpu.core_type<tc>, window_params = [{transform_indices = @transform_0, window_bounds = array<i64: 2, 1024>}, {transform_indices = @transform_1, window_bounds = array<i64: 2, 512>}, {pipeline_mode = #tpu.pipeline_mode<synchronous>, transform_indices = @transform_2, window_bounds = array<i64: 1, 1>}]} {
    %c0_i32 = arith.constant 0 : i32
    %0 = arith.cmpi eq, %arg0, %c0_i32 : i32
    %1 = arith.extui %0 : i1 to i32
    %c0_i32_0 = arith.constant 0 : i32
    %2 = arith.cmpi ne, %1, %c0_i32_0 : i32
    scf.if %2 {
      %cst_19 = arith.constant 0.000000e+00 : f32
      %28 = vector.broadcast %cst_19 : f32 to vector<2x2xf32>
      %c0_20 = arith.constant 0 : index
      %c0_21 = arith.constant 0 : index
      %29 = vector.load %arg4[%c0_20, %c0_21] : memref<2x2xf32, #tpu.memory_space<vmem>>, vector<2x2xf32>
      tpu.vector_store %arg4[%c0_20, %c0_21], %28 {strides = array<i32>} : memref<2x2xf32, #tpu.memory_space<vmem>>, vector<2x2xf32>,
      %cst_22 = arith.constant 0.000000e+00 : f32
      %30 = vector.broadcast %cst_22 : f32 to vector<2x2xf32>
      %c0_23 = arith.constant 0 : index
      %c0_24 = arith.constant 0 : index
      %31 = vector.load %arg5[%c0_23, %c0_24] : memref<2x2xf32, #tpu.memory_space<vmem>>, vector<2x2xf32>
      tpu.vector_store %arg5[%c0_23, %c0_24], %30 {strides = array<i32>} : memref<2x2xf32, #tpu.memory_space<vmem>>, vector<2x2xf32>,
    } else {
    }
    %c0 = arith.constant 0 : index
    %c0_1 = arith.constant 0 : index
    %3 = vector.load %arg1[%c0, %c0_1] : memref<2x1024xf32, #tpu.memory_space<vmem>>, vector<2x1024xf32>
    %cst = arith.constant dense<0.000000e+00> : vector<1024xf32>
    %4 = vector.multi_reduction <add>, %3, %cst [0] : vector<2x1024xf32> to vector<1024xf32>
    %5 = vector.shape_cast %4 : vector<1024xf32> to vector<1x1024xf32>
    %cst_2 = arith.constant 2.000000e+00 : f32
    %6 = vector.broadcast %cst_2 : f32 to vector<1x1024xf32>
    %7 = arith.divf %5, %6 : vector<1x1024xf32>
    %8 = vector.broadcast %7 : vector<1x1024xf32> to vector<2x1024xf32>
    %9 = arith.subf %3, %8 : vector<2x1024xf32>
    %c0_3 = arith.constant 0 : index
    %c0_4 = arith.constant 0 : index
    %10 = vector.load %arg4[%c0_3, %c0_4] : memref<2x2xf32, #tpu.memory_space<vmem>>, vector<2x2xf32>
    %cst_5 = arith.constant dense<0.000000e+00> : vector<2x2xf32>
    %11 = tpu.matmul %9, %9, %cst_5 {dimension_numbers = #tpu.dot_dimension_numbers<[1], [1], [0], [0], [0, 0, 1, 0], [], []>} : vector<2x1024xf32>, vector<2x1024xf32>, vector<2x2xf32> -> vector<2x2xf32>
    %12 = arith.addf %10, %11 : vector<2x2xf32>
    %c0_6 = arith.constant 0 : index
    %c0_7 = arith.constant 0 : index
    %13 = vector.load %arg4[%c0_6, %c0_7] : memref<2x2xf32, #tpu.memory_space<vmem>>, vector<2x2xf32>
    tpu.vector_store %arg4[%c0_6, %c0_7], %12 {strides = array<i32>} : memref<2x2xf32, #tpu.memory_space<vmem>>, vector<2x2xf32>,
    %c0_8 = arith.constant 0 : index
    %c0_9 = arith.constant 0 : index
    %14 = vector.load %arg2[%c0_8, %c0_9] : memref<2x512xf32, #tpu.memory_space<vmem>>, vector<2x512xf32>
    %cst_10 = arith.constant dense<0.000000e+00> : vector<512xf32>
    %15 = vector.multi_reduction <add>, %14, %cst_10 [0] : vector<2x512xf32> to vector<512xf32>
    %16 = vector.shape_cast %15 : vector<512xf32> to vector<1x512xf32>
    %cst_11 = arith.constant 2.000000e+00 : f32
    %17 = vector.broadcast %cst_11 : f32 to vector<1x512xf32>
    %18 = arith.divf %16, %17 : vector<1x512xf32>
    %19 = vector.broadcast %18 : vector<1x512xf32> to vector<2x512xf32>
    %20 = arith.subf %14, %19 : vector<2x512xf32>
    %c0_12 = arith.constant 0 : index
    %c0_13 = arith.constant 0 : index
    %21 = vector.load %arg5[%c0_12, %c0_13] : memref<2x2xf32, #tpu.memory_space<vmem>>, vector<2x2xf32>
    %cst_14 = arith.constant dense<0.000000e+00> : vector<2x2xf32>
    %22 = tpu.matmul %20, %20, %cst_14 {dimension_numbers = #tpu.dot_dimension_numbers<[1], [1], [0], [0], [0, 0, 1, 0], [], []>} : vector<2x512xf32>, vector<2x512xf32>, vector<2x2xf32> -> vector<2x2xf32>
    %23 = arith.addf %21, %22 : vector<2x2xf32>
    %c0_15 = arith.constant 0 : index
    %c0_16 = arith.constant 0 : index
    %24 = vector.load %arg5[%c0_15, %c0_16] : memref<2x2xf32, #tpu.memory_space<vmem>>, vector<2x2xf32>
    tpu.vector_store %arg5[%c0_15, %c0_16], %23 {strides = array<i32>} : memref<2x2xf32, #tpu.memory_space<vmem>>, vector<2x2xf32>,
    %c0_i32_17 = arith.constant 0 : i32
    %25 = arith.cmpi eq, %arg0, %c0_i32_17 : i32
    %26 = arith.extui %25 : i1 to i32
    %c0_i32_18 = arith.constant 0 : i32
    %27 = arith.cmpi ne, %26, %c0_i32_18 : i32
    scf.if %27 {
      %c0_19 = arith.constant 0 : index
      %c0_20 = arith.constant 0 : index
      %28 = vector.load %arg4[%c0_19, %c0_20] : memref<2x2xf32, #tpu.memory_space<vmem>>, vector<2x2xf32>
      %c0_21 = arith.constant 0 : index
      %c0_22 = arith.constant 0 : index
      %29 = vector.load %arg5[%c0_21, %c0_22] : memref<2x2xf32, #tpu.memory_space<vmem>>, vector<2x2xf32>
      %30 = tpu.iota {dimensions = array<i32: 0>} : vector<2x2xi32>
      %31 = tpu.iota {dimensions = array<i32: 1>} : vector<2x2xi32>
      %32 = arith.cmpi eq, %30, %31 : vector<2x2xi32>
      %33 = arith.extui %32 : vector<2x2xi1> to vector<2x2xi32>
      %34 = arith.sitofp %33 : vector<2x2xi32> to vector<2x2xf32>
      %35 = arith.mulf %28, %34 : vector<2x2xf32>
      %cst_23 = arith.constant dense<0.000000e+00> : vector<2xf32>
      %36 = vector.multi_reduction <add>, %35, %cst_23 [1] : vector<2x2xf32> to vector<2xf32>
      %37 = vector.shape_cast %36 : vector<2xf32> to vector<2x1xf32>
      %38 = arith.mulf %28, %34 : vector<2x2xf32>
      %cst_24 = arith.constant dense<0.000000e+00> : vector<2xf32>
      %39 = vector.multi_reduction <add>, %38, %cst_24 [0] : vector<2x2xf32> to vector<2xf32>
      %40 = vector.shape_cast %39 : vector<2xf32> to vector<1x2xf32>
      %41 = arith.mulf %29, %34 : vector<2x2xf32>
      %cst_25 = arith.constant dense<0.000000e+00> : vector<2xf32>
      %42 = vector.multi_reduction <add>, %41, %cst_25 [1] : vector<2x2xf32> to vector<2xf32>
      %43 = vector.shape_cast %42 : vector<2xf32> to vector<2x1xf32>
      %44 = arith.mulf %29, %34 : vector<2x2xf32>
      %cst_26 = arith.constant dense<0.000000e+00> : vector<2xf32>
      %45 = vector.multi_reduction <add>, %44, %cst_26 [0] : vector<2x2xf32> to vector<2xf32>
      %46 = vector.shape_cast %45 : vector<2xf32> to vector<1x2xf32>
      %47 = math.sqrt %37 : vector<2x1xf32>
      %cst_27 = arith.constant 9.99999997E-7 : f32
      %48 = vector.broadcast %cst_27 : f32 to vector<2x1xf32>
      %49 = arith.addf %47, %48 : vector<2x1xf32>
      %50 = math.sqrt %40 : vector<1x2xf32>
      %cst_28 = arith.constant 9.99999997E-7 : f32
      %51 = vector.broadcast %cst_28 : f32 to vector<1x2xf32>
      %52 = arith.addf %50, %51 : vector<1x2xf32>
      %53 = vector.broadcast %49 : vector<2x1xf32> to vector<2x2xf32>
      %54 = vector.broadcast %52 : vector<1x2xf32> to vector<2x2xf32>
      %55 = arith.mulf %53, %54 : vector<2x2xf32>
      %56 = math.sqrt %43 : vector<2x1xf32>
      %cst_29 = arith.constant 9.99999997E-7 : f32
      %57 = vector.broadcast %cst_29 : f32 to vector<2x1xf32>
      %58 = arith.addf %56, %57 : vector<2x1xf32>
      %59 = math.sqrt %46 : vector<1x2xf32>
      %cst_30 = arith.constant 9.99999997E-7 : f32
      %60 = vector.broadcast %cst_30 : f32 to vector<1x2xf32>
      %61 = arith.addf %59, %60 : vector<1x2xf32>
      %62 = vector.broadcast %58 : vector<2x1xf32> to vector<2x2xf32>
      %63 = vector.broadcast %61 : vector<1x2xf32> to vector<2x2xf32>
      %64 = arith.mulf %62, %63 : vector<2x2xf32>
      %65 = arith.divf %28, %55 : vector<2x2xf32>
      %66 = arith.divf %29, %64 : vector<2x2xf32>
      %67 = arith.mulf %65, %66 : vector<2x2xf32>
      %cst_31 = arith.constant dense<0.000000e+00> : vector<2xf32>
      %68 = vector.multi_reduction <add>, %67, %cst_31 [1] : vector<2x2xf32> to vector<2xf32>
      %69 = vector.shape_cast %68 : vector<2xf32> to vector<2x1xf32>
      %cst_32 = arith.constant dense<0.000000e+00> : vector<1xf32>
      %70 = vector.multi_reduction <add>, %69, %cst_32 [0] : vector<2x1xf32> to vector<1xf32>
      %71 = vector.shape_cast %70 : vector<1xf32> to vector<1x1xf32>
      %cst_33 = arith.constant 1.90734863E-6 : f32
      %72 = vector.broadcast %cst_33 : f32 to vector<1x1xf32>
      %73 = arith.mulf %71, %72 : vector<1x1xf32>
      %c0_34 = arith.constant 0 : index
      %c0_35 = arith.constant 0 : index
      %74 = vector.load %arg3[%c0_34, %c0_35] : memref<1x1xf32, #tpu.memory_space<vmem>>, vector<1x1xf32>
      tpu.vector_store %arg3[%c0_34, %c0_35], %73 {strides = array<i32>} : memref<1x1xf32, #tpu.memory_space<vmem>>, vector<1x1xf32>,
    } else {
    }
    return
  }
  func.func @transform_0(%arg0: i32) -> (i32, i32) {
    %c0_i32 = arith.constant 0 : i32
    %c0_i32_0 = arith.constant 0 : i32
    return %c0_i32, %arg0 : i32, i32
  }
  func.func @transform_1(%arg0: i32) -> (i32, i32) {
    %c0_i32 = arith.constant 0 : i32
    %c0_i32_0 = arith.constant 0 : i32
    return %c0_i32, %arg0 : i32, i32
  }
  func.func @transform_2(%arg0: i32) -> (i32, i32) {
    %c0_i32 = arith.constant 0 : i32
    %c0_i32_0 = arith.constant 0 : i32
    %c0_i32_1 = arith.constant 0 : i32
    return %c0_i32, %c0_i32_0 : i32, i32
  }
}

</mosaic_0001>

<llo_original>
// kernel: tpu_custom_call.1
$region0: #{tpu_custom_call.1}
  #allocation0 [shape = 'u32[]', space=smem, size = 0x4, offset = 0x4, fixed_abs, tag = 'smem constant byte address 0x4 - core index']
  #allocation1 [shape = 'u32[144,128]{1,0:T(1,128)}', space=vmem, size = 0x12000, scoped, tag = 'internal scratch']
  #allocation2 [shape = 'f32[2,2]{1,0:T(2,128)}', space=vmem, size = 0x400, scoped, tag = 'scratch operand']
  #allocation3 [shape = 'f32[2,2]{1,0:T(2,128)}', space=vmem, size = 0x400, scoped, tag = 'scratch operand']
  %s0 = inlined_call_operand.hbm [shape: f32[2,1024], index: 0, kind: input, shape index: {}]
  %s1 = inlined_call_operand.hbm [shape: f32[2,512], index: 1, kind: input, shape index: {}]
  %s2 = inlined_call_operand.hbm [shape: f32[1,1], index: 2, kind: output, shape index: {}]
  %s3 = sld [smem:[#allocation0]]
  $region34: #{tpu_custom_call.1} parent=0
    _
  %s5 = ssub.s32 1, %s3
  %s6 = scalar_select 0, %s5, %s3
  $region1: #{tpu_custom_call.1} parent=0
    #allocation4 [shape = 'u8[8192]{0}', space=vmem, size = 0x2000, scoped, tag = 'input window, operand 0, single buffered']
    #allocation5 [shape = 's32[1]{0}', space=sflag, size = 0x4, scoped, tag = 'scoped memory for tpu_custom_call.1']
    #allocation6 [shape = 's32[1]{0}', space=sflag, size = 0x4, scoped, tag = 'scoped memory for tpu_custom_call.1']
    #allocation7 [shape = 'u8[4096]{0}', space=vmem, size = 0x1000, scoped, tag = 'input window, operand 1, single buffered']
    #allocation8 [shape = 's32[1]{0}', space=sflag, size = 0x4, scoped, tag = 'scoped memory for tpu_custom_call.1']
    #allocation9 [shape = 'u8[512]{0}', space=vmem, size = 0x400, scoped, tag = 'output window, operand 0, single buffered']
    %7 = vsyncpa [#allocation5], 0
    %8 = vsyncpa [#allocation8], 0
    %9 = vsyncpa [#allocation6], 0
    // Predicated region
    $region2: #{tpu_custom_call.1} parent=1 // pred_check
      _
    $region3: #{tpu_custom_call.1} parent=1 // pred_check_branch
      %11 = sbr.rel (0) target = $region5
    $region4: #{tpu_custom_call.1} parent=1 // pred_region
      %s13 = ssub.s32 256, 256
      %14 = vsyncadd [#allocation5], %s13
      %s16 = sshll.u32 [#allocation4], 4
      %s17 = int_to_ptr.vmem [resolvable:$true] %s16
      %19 = dma.hbm_to_vmem [thread:$0]  %s0, 256, %s17, [#allocation5]
    $region5: #{tpu_custom_call.1} parent=1 // pred_fallthru
      _
    // Predicated region
    $region6: #{tpu_custom_call.1} parent=1 // pred_check
      _
    $region7: #{tpu_custom_call.1} parent=1 // pred_check_branch
      %21 = sbr.rel (0) target = $region9
    $region8: #{tpu_custom_call.1} parent=1 // pred_region
      %s23 = ssub.s32 128, 128
      %24 = vsyncadd [#allocation8], %s23
      %s26 = sshll.u32 [#allocation7], 4
      %s27 = int_to_ptr.vmem [resolvable:$true] %s26
      %29 = dma.hbm_to_vmem [thread:$0]  %s1, 128, %s27, [#allocation8]
    $region9: #{tpu_custom_call.1} parent=1 // pred_fallthru
      _
    // Predicated region
    $region10: #{tpu_custom_call.1} parent=1 // pred_check
      _
    $region11: #{tpu_custom_call.1} parent=1 // pred_check_branch
      %31 = sbr.rel (0) target = $region13
    $region12: #{tpu_custom_call.1} parent=1 // pred_region
      %32 = dma.done [#allocation5], 256
    $region13: #{tpu_custom_call.1} parent=1 // pred_fallthru
      _
    // Predicated region
    $region14: #{tpu_custom_call.1} parent=1 // pred_check
      _
    $region15: #{tpu_custom_call.1} parent=1 // pred_check_branch
      %34 = sbr.rel (0) target = $region17
    $region16: #{tpu_custom_call.1} parent=1 // pred_region
      %35 = dma.done [#allocation8], 128
    $region17: #{tpu_custom_call.1} parent=1 // pred_fallthru
      _
    %p36 = scmp.eq.s32.totalorder 0, 0
    // Predicated region
    $region18: #{tpu_custom_call.1} parent=1 // pred_check
      %p37 = pneg %p36
    $region19: #{tpu_custom_call.1} parent=1 // pred_check_branch
      %39 = sbr.rel (%p37) target = $region21
    $region20: #{tpu_custom_call.1} parent=1 // pred_region
      %vm40 = vcmask 9216
      %41 = vst.msk [vmem:[#allocation2] sm:$0x3] %vm40, 0.0
      %42 = vst.msk [vmem:[#allocation3] sm:$0x3] %vm40, 0.0
    $region21: #{tpu_custom_call.1} parent=1 // pred_fallthru
      _
    %v43 = vld [vmem:[#allocation4] sm:$0xff]
    %v44 = vld [vmem:[#allocation4 + $0x8] sm:$0xff]
    %v47 = vcombine.high %v43, %v43
    %v49 = vunpack.c.l.s4 1983009808
    %v50 = vunpack.c.0.s8 %v49
    %v51 = vlaneseq
    %v52 = vshrl.u32 %v51, 7
    %v53 = vsub.s32 %v50, %v52
    %v54 = vrot.slane %v43, %v53
    %v56 = vunpack.c.l.s4 1983009808
    %v57 = vunpack.c.0.s8 %v56
    %v58 = vlaneseq
    %v59 = vshrl.u32 %v58, 7
    %v60 = vsub.s32 %v57, %v59
    %v61 = vrot.slane %v47, %v60
    %v62 = vcombine.high %v54, %v54
    %v63 = vcombine.high %v61, %v61
    %v64 = vcombine.high %v44, %v44
    %v66 = vunpack.c.l.s4 1983009808
    %v67 = vunpack.c.0.s8 %v66
    %v68 = vlaneseq
    %v69 = vshrl.u32 %v68, 7
    %v70 = vsub.s32 %v67, %v69
    %v71 = vrot.slane %v44, %v70
    %v73 = vunpack.c.l.s4 1983009808
    %v74 = vunpack.c.0.s8 %v73
    %v75 = vlaneseq
    %v76 = vshrl.u32 %v75, 7
    %v77 = vsub.s32 %v74, %v76
    %v78 = vrot.slane %v64, %v77
    %v79 = vcombine.high %v71, %v71
    %v80 = vcombine.high %v78, %v78
    %vm89 = vcmask 1041408
    %v90 = vsel %vm89, %v54, 0.0
    %v91 = vrot.slane %v90, 4
    %v92 = vadd.f32 %v90, %v91
    %v93 = vrot.slane %v92, 2
    %v94 = vadd.f32 %v92, %v93
    %v95 = vrot.slane %v94, 1
    %v96 = vadd.f32 %v94, %v95
    %v97 = vsel %vm89, %v62, 0.0
    %v98 = vrot.slane %v97, 4
    %v99 = vadd.f32 %v97, %v98
    %v100 = vrot.slane %v99, 2
    %v101 = vadd.f32 %v99, %v100
    %v102 = vrot.slane %v101, 1
    %v103 = vadd.f32 %v101, %v102
    %v104 = vsel %vm89, %v61, 0.0
    %v105 = vrot.slane %v104, 4
    %v106 = vadd.f32 %v104, %v105
    %v107 = vrot.slane %v106, 2
    %v108 = vadd.f32 %v106, %v107
    %v109 = vrot.slane %v108, 1
    %v110 = vadd.f32 %v108, %v109
    %v111 = vsel %vm89, %v63, 0.0
    %v112 = vrot.slane %v111, 4
    %v113 = vadd.f32 %v111, %v112
    %v114 = vrot.slane %v113, 2
    %v115 = vadd.f32 %v113, %v114
    %v116 = vrot.slane %v115, 1
    %v117 = vadd.f32 %v115, %v116
    %v118 = vsel %vm89, %v71, 0.0
    %v119 = vrot.slane %v118, 4
    %v120 = vadd.f32 %v118, %v119
    %v121 = vrot.slane %v120, 2
    %v122 = vadd.f32 %v120, %v121
    %v123 = vrot.slane %v122, 1
    %v124 = vadd.f32 %v122, %v123
    %v125 = vsel %vm89, %v79, 0.0
    %v126 = vrot.slane %v125, 4
    %v127 = vadd.f32 %v125, %v126
    %v128 = vrot.slane %v127, 2
    %v129 = vadd.f32 %v127, %v128
    %v130 = vrot.slane %v129, 1
    %v131 = vadd.f32 %v129, %v130
    %v132 = vsel %vm89, %v78, 0.0
    %v133 = vrot.slane %v132, 4
    %v134 = vadd.f32 %v132, %v133
    %v135 = vrot.slane %v134, 2
    %v136 = vadd.f32 %v134, %v135
    %v137 = vrot.slane %v136, 1
    %v138 = vadd.f32 %v136, %v137
    %v139 = vsel %vm89, %v80, 0.0
    %v140 = vrot.slane %v139, 4
    %v141 = vadd.f32 %v139, %v140
    %v142 = vrot.slane %v141, 2
    %v143 = vadd.f32 %v141, %v142
    %v144 = vrot.slane %v143, 1
    %v145 = vadd.f32 %v143, %v144
    %v146 = vrcp.pop 2.0
    %v147 = vmul.f32 %v96, %v146
    %v148 = vmul.f32 %v103, %v146
    %v149 = vmul.f32 %v110, %v146
    %v150 = vmul.f32 %v117, %v146
    %v151 = vmul.f32 %v124, %v146
    %v152 = vmul.f32 %v131, %v146
    %v153 = vmul.f32 %v138, %v146
    %v154 = vmul.f32 %v145, %v146
    %v163 = vcombine.low %v147, %v148
    %v164 = vcombine.low %v149, %v150
    %v166 = vunpack.c.l.s4 1983009808
    %v167 = vunpack.c.0.s8 %v166
    %v168 = vlaneseq
    %v169 = vshrl.u32 %v168, 7
    %v170 = vsub.s32 %v167, %v169
    %v171 = vrot.slane %v163, %v170
    %v173 = vunpack.c.l.s4 1983009808
    %v174 = vunpack.c.0.s8 %v173
    %v175 = vlaneseq
    %v176 = vshrl.u32 %v175, 7
    %v177 = vsub.s32 %v174, %v176
    %v178 = vrot.slane %v164, %v177
    %v179 = vcombine.low %v171, %v178
    %v180 = vcombine.low %v151, %v152
    %v181 = vcombine.low %v153, %v154
    %v183 = vunpack.c.l.s4 1983009808
    %v184 = vunpack.c.0.s8 %v183
    %v185 = vlaneseq
    %v186 = vshrl.u32 %v185, 7
    %v187 = vsub.s32 %v184, %v186
    %v188 = vrot.slane %v180, %v187
    %v190 = vunpack.c.l.s4 1983009808
    %v191 = vunpack.c.0.s8 %v190
    %v192 = vlaneseq
    %v193 = vshrl.u32 %v192, 7
    %v194 = vsub.s32 %v191, %v193
    %v195 = vrot.slane %v181, %v194
    %v196 = vcombine.low %v188, %v195
    %v199 = vsub.f32 %v43, %v179
    %v200 = vsub.f32 %v44, %v196
    %v201 = vld [vmem:[#allocation2] sm:$0x3]
    %v204 = vcombine.high %v199, %v199
    %v206 = vunpack.c.l.s4 1983009808
    %v207 = vunpack.c.0.s8 %v206
    %v208 = vlaneseq
    %v209 = vshrl.u32 %v208, 7
    %v210 = vsub.s32 %v207, %v209
    %v211 = vrot.slane %v199, %v210
    %v213 = vunpack.c.l.s4 1983009808
    %v214 = vunpack.c.0.s8 %v213
    %v215 = vlaneseq
    %v216 = vshrl.u32 %v215, 7
    %v217 = vsub.s32 %v214, %v216
    %v218 = vrot.slane %v204, %v217
    %v219 = vcombine.high %v211, %v211
    %v220 = vcombine.high %v218, %v218
    %v221 = vcombine.high %v200, %v200
    %v223 = vunpack.c.l.s4 1983009808
    %v224 = vunpack.c.0.s8 %v223
    %v225 = vlaneseq
    %v226 = vshrl.u32 %v225, 7
    %v227 = vsub.s32 %v224, %v226
    %v228 = vrot.slane %v200, %v227
    %v230 = vunpack.c.l.s4 1983009808
    %v231 = vunpack.c.0.s8 %v230
    %v232 = vlaneseq
    %v233 = vshrl.u32 %v232, 7
    %v234 = vsub.s32 %v231, %v233
    %v235 = vrot.slane %v221, %v234
    %v236 = vcombine.high %v228, %v228
    %v237 = vcombine.high %v235, %v235
    %246 = vmatprep.subr.mxu0 0.0
    %247 = vmatpush1.xpose.msra.mxu0 0.0
    %248 = vmatprep.subr.mxu0 0.0
    %249 = vmatpush1.xpose.msra.mxu0 0.0
    %250 = vmatprep.subr.mxu0 0.0
    %251 = vmatpush1.xpose.msra.mxu0 0.0
    %252 = vmatprep.subr.mxu0 0.0
    %253 = vmatpush1.xpose.msra.mxu0 0.0
    %254 = vmatprep.subr.mxu0 0.0
    %255 = vmatpush1.xpose.msra.mxu0 0.0
    %256 = vmatprep.subr.mxu0 0.0
    %257 = vmatpush1.xpose.msra.mxu0 0.0
    %258 = vmatprep.subr.mxu0 0.0
    %259 = vmatpush1.xpose.msra.mxu0 0.0
    %260 = vmatprep.subr.mxu0 0.0
    %261 = vmatpush1.xpose.msra.mxu0 0.0
    %262 = vmatprep.subr.mxu0 0.0
    %263 = vmatpush1.xpose.msra.mxu0 0.0
    %264 = vmatprep.subr.mxu0 0.0
    %265 = vmatpush1.xpose.msra.mxu0 0.0
    %266 = vmatprep.subr.mxu0 0.0
    %267 = vmatpush1.xpose.msra.mxu0 0.0
    %268 = vmatprep.subr.mxu0 0.0
    %269 = vmatpush1.xpose.msra.mxu0 0.0
    %270 = vmatprep.subr.mxu0 0.0
    %271 = vmatpush1.xpose.msra.mxu0 0.0
    %272 = vmatprep.subr.mxu0 0.0
    %273 = vmatpush1.xpose.msra.mxu0 0.0
    %274 = vmatprep.subr.mxu0 0.0
    %275 = vmatpush1.xpose.msra.mxu0 0.0
    %276 = vmatprep.subr.mxu0 %v219
    %277 = vmatpush1.xpose.msra.mxu0 %v211
    %278 = vmatprep.subr.mxu0 0.0
    %279 = vmatpush2.xpose.msra.mxu0 0.0
    %280 = vmatprep.subr.mxu0 0.0
    %281 = vmatpush2.xpose.msra.mxu0 0.0
    %282 = vmatprep.subr.mxu0 0.0
    %283 = vmatpush2.xpose.msra.mxu0 0.0
    %284 = vmatprep.subr.mxu0 0.0
    %285 = vmatpush2.xpose.msra.mxu0 0.0
    %286 = vmatprep.subr.mxu0 0.0
    %287 = vmatpush2.xpose.msra.mxu0 0.0
    %288 = vmatprep.subr.mxu0 0.0
    %289 = vmatpush2.xpose.msra.mxu0 0.0
    %290 = vmatprep.subr.mxu0 0.0
    %291 = vmatpush2.xpose.msra.mxu0 0.0
    %292 = vmatprep.subr.mxu0 0.0
    %293 = vmatpush2.xpose.msra.mxu0 0.0
    %294 = vmatprep.subr.mxu0 0.0
    %295 = vmatpush2.xpose.msra.mxu0 0.0
    %296 = vmatprep.subr.mxu0 0.0
    %297 = vmatpush2.xpose.msra.mxu0 0.0
    %298 = vmatprep.subr.mxu0 0.0
    %299 = vmatpush2.xpose.msra.mxu0 0.0
    %300 = vmatprep.subr.mxu0 0.0
    %301 = vmatpush2.xpose.msra.mxu0 0.0
    %302 = vmatprep.subr.mxu0 0.0
    %303 = vmatpush2.xpose.msra.mxu0 0.0
    %304 = vmatprep.subr.mxu0 0.0
    %305 = vmatpush2.xpose.msra.mxu0 0.0
    %306 = vmatprep.subr.mxu0 0.0
    %307 = vmatpush2.xpose.msra.mxu0 0.0
    %308 = vmatprep.subr.mxu0 0.0
    %309 = vmatpush2.xpose.msra.mxu0 0.0
    %310 = vmatprep.mubr.f32.mxu0 %v219
    %311 = vmatmul.mubr.f32.gmra.mxu0 %v211
    %v312 = vpop.f32.mrf.mxu0
    %v313 = vadd.f32 0.0, %v312
    %v314 = vpop.f32.mrf.mxu0
    %315 = vdwg.mxu0
    %316 = vmatprep.subr.mxu0 0.0
    %317 = vmatpush1.xpose.msra.mxu0 0.0
    %318 = vmatprep.subr.mxu0 0.0
    %319 = vmatpush1.xpose.msra.mxu0 0.0
    %320 = vmatprep.subr.mxu0 0.0
    %321 = vmatpush1.xpose.msra.mxu0 0.0
    %322 = vmatprep.subr.mxu0 0.0
    %323 = vmatpush1.xpose.msra.mxu0 0.0
    %324 = vmatprep.subr.mxu0 0.0
    %325 = vmatpush1.xpose.msra.mxu0 0.0
    %326 = vmatprep.subr.mxu0 0.0
    %327 = vmatpush1.xpose.msra.mxu0 0.0
    %328 = vmatprep.subr.mxu0 0.0
    %329 = vmatpush1.xpose.msra.mxu0 0.0
    %330 = vmatprep.subr.mxu0 0.0
    %331 = vmatpush1.xpose.msra.mxu0 0.0
    %332 = vmatprep.subr.mxu0 0.0
    %333 = vmatpush1.xpose.msra.mxu0 0.0
    %334 = vmatprep.subr.mxu0 0.0
    %335 = vmatpush1.xpose.msra.mxu0 0.0
    %336 = vmatprep.subr.mxu0 0.0
    %337 = vmatpush1.xpose.msra.mxu0 0.0
    %338 = vmatprep.subr.mxu0 0.0
    %339 = vmatpush1.xpose.msra.mxu0 0.0
    %340 = vmatprep.subr.mxu0 0.0
    %341 = vmatpush1.xpose.msra.mxu0 0.0
    %342 = vmatprep.subr.mxu0 0.0
    %343 = vmatpush1.xpose.msra.mxu0 0.0
    %344 = vmatprep.subr.mxu0 0.0
    %345 = vmatpush1.xpose.msra.mxu0 0.0
    %346 = vmatprep.subr.mxu0 %v220
    %347 = vmatpush1.xpose.msra.mxu0 %v218
    %348 = vmatprep.subr.mxu0 0.0
    %349 = vmatpush2.xpose.msra.mxu0 0.0
    %350 = vmatprep.subr.mxu0 0.0
    %351 = vmatpush2.xpose.msra.mxu0 0.0
    %352 = vmatprep.subr.mxu0 0.0
    %353 = vmatpush2.xpose.msra.mxu0 0.0
    %354 = vmatprep.subr.mxu0 0.0
    %355 = vmatpush2.xpose.msra.mxu0 0.0
    %356 = vmatprep.subr.mxu0 0.0
    %357 = vmatpush2.xpose.msra.mxu0 0.0
    %358 = vmatprep.subr.mxu0 0.0
    %359 = vmatpush2.xpose.msra.mxu0 0.0
    %360 = vmatprep.subr.mxu0 0.0
    %361 = vmatpush2.xpose.msra.mxu0 0.0
    %362 = vmatprep.subr.mxu0 0.0
    %363 = vmatpush2.xpose.msra.mxu0 0.0
    %364 = vmatprep.subr.mxu0 0.0
    %365 = vmatpush2.xpose.msra.mxu0 0.0
    %366 = vmatprep.subr.mxu0 0.0
    %367 = vmatpush2.xpose.msra.mxu0 0.0
    %368 = vmatprep.subr.mxu0 0.0
    %369 = vmatpush2.xpose.msra.mxu0 0.0
    %370 = vmatprep.subr.mxu0 0.0
    %371 = vmatpush2.xpose.msra.mxu0 0.0
    %372 = vmatprep.subr.mxu0 0.0
    %373 = vmatpush2.xpose.msra.mxu0 0.0
    %374 = vmatprep.subr.mxu0 0.0
    %375 = vmatpush2.xpose.msra.mxu0 0.0
    %376 = vmatprep.subr.mxu0 0.0
    %377 = vmatpush2.xpose.msra.mxu0 0.0
    %378 = vmatprep.subr.mxu0 0.0
    %379 = vmatpush2.xpose.msra.mxu0 0.0
    %380 = vmatprep.mubr.f32.mxu0 %v220
    %381 = vmatmul.mubr.f32.gmra.mxu0 %v218
    %v382 = vpop.f32.mrf.mxu0
    %v383 = vadd.f32 %v313, %v382
    %v384 = vpop.f32.mrf.mxu0
    %385 = vdwg.mxu0
    %386 = vmatprep.subr.mxu0 0.0
    %387 = vmatpush1.xpose.msra.mxu0 0.0
    %388 = vmatprep.subr.mxu0 0.0
    %389 = vmatpush1.xpose.msra.mxu0 0.0
    %390 = vmatprep.subr.mxu0 0.0
    %391 = vmatpush1.xpose.msra.mxu0 0.0
    %392 = vmatprep.subr.mxu0 0.0
    %393 = vmatpush1.xpose.msra.mxu0 0.0
    %394 = vmatprep.subr.mxu0 0.0
    %395 = vmatpush1.xpose.msra.mxu0 0.0
    %396 = vmatprep.subr.mxu0 0.0
    %397 = vmatpush1.xpose.msra.mxu0 0.0
    %398 = vmatprep.subr.mxu0 0.0
    %399 = vmatpush1.xpose.msra.mxu0 0.0
    %400 = vmatprep.subr.mxu0 0.0
    %401 = vmatpush1.xpose.msra.mxu0 0.0
    %402 = vmatprep.subr.mxu0 0.0
    %403 = vmatpush1.xpose.msra.mxu0 0.0
    %404 = vmatprep.subr.mxu0 0.0
    %405 = vmatpush1.xpose.msra.mxu0 0.0
    %406 = vmatprep.subr.mxu0 0.0
    %407 = vmatpush1.xpose.msra.mxu0 0.0
    %408 = vmatprep.subr.mxu0 0.0
    %409 = vmatpush1.xpose.msra.mxu0 0.0
    %410 = vmatprep.subr.mxu0 0.0
    %411 = vmatpush1.xpose.msra.mxu0 0.0
    %412 = vmatprep.subr.mxu0 0.0
    %413 = vmatpush1.xpose.msra.mxu0 0.0
    %414 = vmatprep.subr.mxu0 0.0
    %415 = vmatpush1.xpose.msra.mxu0 0.0
    %416 = vmatprep.subr.mxu0 %v236
    %417 = vmatpush1.xpose.msra.mxu0 %v228
    %418 = vmatprep.subr.mxu0 0.0
    %419 = vmatpush2.xpose.msra.mxu0 0.0
    %420 = vmatprep.subr.mxu0 0.0
    %421 = vmatpush2.xpose.msra.mxu0 0.0
    %422 = vmatprep.subr.mxu0 0.0
    %423 = vmatpush2.xpose.msra.mxu0 0.0
    %424 = vmatprep.subr.mxu0 0.0
    %425 = vmatpush2.xpose.msra.mxu0 0.0
    %426 = vmatprep.subr.mxu0 0.0
    %427 = vmatpush2.xpose.msra.mxu0 0.0
    %428 = vmatprep.subr.mxu0 0.0
    %429 = vmatpush2.xpose.msra.mxu0 0.0
    %430 = vmatprep.subr.mxu0 0.0
    %431 = vmatpush2.xpose.msra.mxu0 0.0
    %432 = vmatprep.subr.mxu0 0.0
    %433 = vmatpush2.xpose.msra.mxu0 0.0
    %434 = vmatprep.subr.mxu0 0.0
    %435 = vmatpush2.xpose.msra.mxu0 0.0
    %436 = vmatprep.subr.mxu0 0.0
    %437 = vmatpush2.xpose.msra.mxu0 0.0
    %438 = vmatprep.subr.mxu0 0.0
    %439 = vmatpush2.xpose.msra.mxu0 0.0
    %440 = vmatprep.subr.mxu0 0.0
    %441 = vmatpush2.xpose.msra.mxu0 0.0
    %442 = vmatprep.subr.mxu0 0.0
    %443 = vmatpush2.xpose.msra.mxu0 0.0
    %444 = vmatprep.subr.mxu0 0.0
    %445 = vmatpush2.xpose.msra.mxu0 0.0
    %446 = vmatprep.subr.mxu0 0.0
    %447 = vmatpush2.xpose.msra.mxu0 0.0
    %448 = vmatprep.subr.mxu0 0.0
    %449 = vmatpush2.xpose.msra.mxu0 0.0
    %450 = vmatprep.mubr.f32.mxu0 %v236
    %451 = vmatmul.mubr.f32.gmra.mxu0 %v228
    %v452 = vpop.f32.mrf.mxu0
    %v453 = vadd.f32 %v383, %v452
    %v454 = vpop.f32.mrf.mxu0
    %455 = vdwg.mxu0
    %456 = vmatprep.subr.mxu0 0.0
    %457 = vmatpush1.xpose.msra.mxu0 0.0
    %458 = vmatprep.subr.mxu0 0.0
    %459 = vmatpush1.xpose.msra.mxu0 0.0
    %460 = vmatprep.subr.mxu0 0.0
    %461 = vmatpush1.xpose.msra.mxu0 0.0
    %462 = vmatprep.subr.mxu0 0.0
    %463 = vmatpush1.xpose.msra.mxu0 0.0
    %464 = vmatprep.subr.mxu0 0.0
    %465 = vmatpush1.xpose.msra.mxu0 0.0
    %466 = vmatprep.subr.mxu0 0.0
    %467 = vmatpush1.xpose.msra.mxu0 0.0
    %468 = vmatprep.subr.mxu0 0.0
    %469 = vmatpush1.xpose.msra.mxu0 0.0
    %470 = vmatprep.subr.mxu0 0.0
    %471 = vmatpush1.xpose.msra.mxu0 0.0
    %472 = vmatprep.subr.mxu0 0.0
    %473 = vmatpush1.xpose.msra.mxu0 0.0
    %474 = vmatprep.subr.mxu0 0.0
    %475 = vmatpush1.xpose.msra.mxu0 0.0
    %476 = vmatprep.subr.mxu0 0.0
    %477 = vmatpush1.xpose.msra.mxu0 0.0
    %478 = vmatprep.subr.mxu0 0.0
    %479 = vmatpush1.xpose.msra.mxu0 0.0
    %480 = vmatprep.subr.mxu0 0.0
    %481 = vmatpush1.xpose.msra.mxu0 0.0
    %482 = vmatprep.subr.mxu0 0.0
    %483 = vmatpush1.xpose.msra.mxu0 0.0
    %484 = vmatprep.subr.mxu0 0.0
    %485 = vmatpush1.xpose.msra.mxu0 0.0
    %486 = vmatprep.subr.mxu0 %v237
    %487 = vmatpush1.xpose.msra.mxu0 %v235
    %488 = vmatprep.subr.mxu0 0.0
    %489 = vmatpush2.xpose.msra.mxu0 0.0
    %490 = vmatprep.subr.mxu0 0.0
    %491 = vmatpush2.xpose.msra.mxu0 0.0
    %492 = vmatprep.subr.mxu0 0.0
    %493 = vmatpush2.xpose.msra.mxu0 0.0
    %494 = vmatprep.subr.mxu0 0.0
    %495 = vmatpush2.xpose.msra.mxu0 0.0
    %496 = vmatprep.subr.mxu0 0.0
    %497 = vmatpush2.xpose.msra.mxu0 0.0
    %498 = vmatprep.subr.mxu0 0.0
    %499 = vmatpush2.xpose.msra.mxu0 0.0
    %500 = vmatprep.subr.mxu0 0.0
    %501 = vmatpush2.xpose.msra.mxu0 0.0
    %502 = vmatprep.subr.mxu0 0.0
    %503 = vmatpush2.xpose.msra.mxu0 0.0
    %504 = vmatprep.subr.mxu0 0.0
    %505 = vmatpush2.xpose.msra.mxu0 0.0
    %506 = vmatprep.subr.mxu0 0.0
    %507 = vmatpush2.xpose.msra.mxu0 0.0
    %508 = vmatprep.subr.mxu0 0.0
    %509 = vmatpush2.xpose.msra.mxu0 0.0
    %510 = vmatprep.subr.mxu0 0.0
    %511 = vmatpush2.xpose.msra.mxu0 0.0
    %512 = vmatprep.subr.mxu0 0.0
    %513 = vmatpush2.xpose.msra.mxu0 0.0
    %514 = vmatprep.subr.mxu0 0.0
    %515 = vmatpush2.xpose.msra.mxu0 0.0
    %516 = vmatprep.subr.mxu0 0.0
    %517 = vmatpush2.xpose.msra.mxu0 0.0
    %518 = vmatprep.subr.mxu0 0.0
    %519 = vmatpush2.xpose.msra.mxu0 0.0
    %520 = vmatprep.mubr.f32.mxu0 %v237
    %521 = vmatmul.mubr.f32.gmra.mxu0 %v235
    %v522 = vpop.f32.mrf.mxu0
    %v523 = vadd.f32 %v453, %v522
    %v524 = vpop.f32.mrf.mxu0
    %525 = vdwg.mxu0
    %v526 = vadd.f32 %v201, %v523
    %vm527 = vcmask 9216
    %528 = vst.msk [vmem:[#allocation2] sm:$0x3] %vm527, %v526
    %v529 = vld [vmem:[#allocation7] sm:$0xff]
    %v531 = vcombine.high %v529, %v529
    %v533 = vunpack.c.l.s4 1983009808
    %v534 = vunpack.c.0.s8 %v533
    %v535 = vlaneseq
    %v536 = vshrl.u32 %v535, 7
    %v537 = vsub.s32 %v534, %v536
    %v538 = vrot.slane %v529, %v537
    %v540 = vunpack.c.l.s4 1983009808
    %v541 = vunpack.c.0.s8 %v540
    %v542 = vlaneseq
    %v543 = vshrl.u32 %v542, 7
    %v544 = vsub.s32 %v541, %v543
    %v545 = vrot.slane %v531, %v544
    %v546 = vcombine.high %v538, %v538
    %v547 = vcombine.high %v545, %v545
    %v552 = vsel %vm89, %v538, 0.0
    %v553 = vrot.slane %v552, 4
    %v554 = vadd.f32 %v552, %v553
    %v555 = vrot.slane %v554, 2
    %v556 = vadd.f32 %v554, %v555
    %v557 = vrot.slane %v556, 1
    %v558 = vadd.f32 %v556, %v557
    %v559 = vsel %vm89, %v546, 0.0
    %v560 = vrot.slane %v559, 4
    %v561 = vadd.f32 %v559, %v560
    %v562 = vrot.slane %v561, 2
    %v563 = vadd.f32 %v561, %v562
    %v564 = vrot.slane %v563, 1
    %v565 = vadd.f32 %v563, %v564
    %v566 = vsel %vm89, %v545, 0.0
    %v567 = vrot.slane %v566, 4
    %v568 = vadd.f32 %v566, %v567
    %v569 = vrot.slane %v568, 2
    %v570 = vadd.f32 %v568, %v569
    %v571 = vrot.slane %v570, 1
    %v572 = vadd.f32 %v570, %v571
    %v573 = vsel %vm89, %v547, 0.0
    %v574 = vrot.slane %v573, 4
    %v575 = vadd.f32 %v573, %v574
    %v576 = vrot.slane %v575, 2
    %v577 = vadd.f32 %v575, %v576
    %v578 = vrot.slane %v577, 1
    %v579 = vadd.f32 %v577, %v578
    %v580 = vmul.f32 %v558, %v146
    %v581 = vmul.f32 %v565, %v146
    %v582 = vmul.f32 %v572, %v146
    %v583 = vmul.f32 %v579, %v146
    %v588 = vcombine.low %v580, %v581
    %v589 = vcombine.low %v582, %v583
    %v591 = vunpack.c.l.s4 1983009808
    %v592 = vunpack.c.0.s8 %v591
    %v593 = vlaneseq
    %v594 = vshrl.u32 %v593, 7
    %v595 = vsub.s32 %v592, %v594
    %v596 = vrot.slane %v588, %v595
    %v598 = vunpack.c.l.s4 1983009808
    %v599 = vunpack.c.0.s8 %v598
    %v600 = vlaneseq
    %v601 = vshrl.u32 %v600, 7
    %v602 = vsub.s32 %v599, %v601
    %v603 = vrot.slane %v589, %v602
    %v604 = vcombine.low %v596, %v603
    %v606 = vsub.f32 %v529, %v604
    %v607 = vld [vmem:[#allocation3] sm:$0x3]
    %v609 = vcombine.high %v606, %v606
    %v611 = vunpack.c.l.s4 1983009808
    %v612 = vunpack.c.0.s8 %v611
    %v613 = vlaneseq
    %v614 = vshrl.u32 %v613, 7
    %v615 = vsub.s32 %v612, %v614
    %v616 = vrot.slane %v606, %v615
    %v618 = vunpack.c.l.s4 1983009808
    %v619 = vunpack.c.0.s8 %v618
    %v620 = vlaneseq
    %v621 = vshrl.u32 %v620, 7
    %v622 = vsub.s32 %v619, %v621
    %v623 = vrot.slane %v609, %v622
    %v624 = vcombine.high %v616, %v616
    %v625 = vcombine.high %v623, %v623
    %630 = vmatprep.subr.mxu0 0.0
    %631 = vmatpush1.xpose.msra.mxu0 0.0
    %632 = vmatprep.subr.mxu0 0.0
    %633 = vmatpush1.xpose.msra.mxu0 0.0
    %634 = vmatprep.subr.mxu0 0.0
    %635 = vmatpush1.xpose.msra.mxu0 0.0
    %636 = vmatprep.subr.mxu0 0.0
    %637 = vmatpush1.xpose.msra.mxu0 0.0
    %638 = vmatprep.subr.mxu0 0.0
    %639 = vmatpush1.xpose.msra.mxu0 0.0
    %640 = vmatprep.subr.mxu0 0.0
    %641 = vmatpush1.xpose.msra.mxu0 0.0
    %642 = vmatprep.subr.mxu0 0.0
    %643 = vmatpush1.xpose.msra.mxu0 0.0
    %644 = vmatprep.subr.mxu0 0.0
    %645 = vmatpush1.xpose.msra.mxu0 0.0
    %646 = vmatprep.subr.mxu0 0.0
    %647 = vmatpush1.xpose.msra.mxu0 0.0
    %648 = vmatprep.subr.mxu0 0.0
    %649 = vmatpush1.xpose.msra.mxu0 0.0
    %650 = vmatprep.subr.mxu0 0.0
    %651 = vmatpush1.xpose.msra.mxu0 0.0
    %652 = vmatprep.subr.mxu0 0.0
    %653 = vmatpush1.xpose.msra.mxu0 0.0
    %654 = vmatprep.subr.mxu0 0.0
    %655 = vmatpush1.xpose.msra.mxu0 0.0
    %656 = vmatprep.subr.mxu0 0.0
    %657 = vmatpush1.xpose.msra.mxu0 0.0
    %658 = vmatprep.subr.mxu0 0.0
    %659 = vmatpush1.xpose.msra.mxu0 0.0
    %660 = vmatprep.subr.mxu0 %v624
    %661 = vmatpush1.xpose.msra.mxu0 %v616
    %662 = vmatprep.subr.mxu0 0.0
    %663 = vmatpush2.xpose.msra.mxu0 0.0
    %664 = vmatprep.subr.mxu0 0.0
    %665 = vmatpush2.xpose.msra.mxu0 0.0
    %666 = vmatprep.subr.mxu0 0.0
    %667 = vmatpush2.xpose.msra.mxu0 0.0
    %668 = vmatprep.subr.mxu0 0.0
    %669 = vmatpush2.xpose.msra.mxu0 0.0
    %670 = vmatprep.subr.mxu0 0.0
    %671 = vmatpush2.xpose.msra.mxu0 0.0
    %672 = vmatprep.subr.mxu0 0.0
    %673 = vmatpush2.xpose.msra.mxu0 0.0
    %674 = vmatprep.subr.mxu0 0.0
    %675 = vmatpush2.xpose.msra.mxu0 0.0
    %676 = vmatprep.subr.mxu0 0.0
    %677 = vmatpush2.xpose.msra.mxu0 0.0
    %678 = vmatprep.subr.mxu0 0.0
    %679 = vmatpush2.xpose.msra.mxu0 0.0
    %680 = vmatprep.subr.mxu0 0.0
    %681 = vmatpush2.xpose.msra.mxu0 0.0
    %682 = vmatprep.subr.mxu0 0.0
    %683 = vmatpush2.xpose.msra.mxu0 0.0
    %684 = vmatprep.subr.mxu0 0.0
    %685 = vmatpush2.xpose.msra.mxu0 0.0
    %686 = vmatprep.subr.mxu0 0.0
    %687 = vmatpush2.xpose.msra.mxu0 0.0
    %688 = vmatprep.subr.mxu0 0.0
    %689 = vmatpush2.xpose.msra.mxu0 0.0
    %690 = vmatprep.subr.mxu0 0.0
    %691 = vmatpush2.xpose.msra.mxu0 0.0
    %692 = vmatprep.subr.mxu0 0.0
    %693 = vmatpush2.xpose.msra.mxu0 0.0
    %694 = vmatprep.mubr.f32.mxu0 %v624
    %695 = vmatmul.mubr.f32.gmra.mxu0 %v616
    %v696 = vpop.f32.mrf.mxu0
    %v697 = vadd.f32 0.0, %v696
    %v698 = vpop.f32.mrf.mxu0
    %699 = vdwg.mxu0
    %700 = vmatprep.subr.mxu0 0.0
    %701 = vmatpush1.xpose.msra.mxu0 0.0
    %702 = vmatprep.subr.mxu0 0.0
    %703 = vmatpush1.xpose.msra.mxu0 0.0
    %704 = vmatprep.subr.mxu0 0.0
    %705 = vmatpush1.xpose.msra.mxu0 0.0
    %706 = vmatprep.subr.mxu0 0.0
    %707 = vmatpush1.xpose.msra.mxu0 0.0
    %708 = vmatprep.subr.mxu0 0.0
    %709 = vmatpush1.xpose.msra.mxu0 0.0
    %710 = vmatprep.subr.mxu0 0.0
    %711 = vmatpush1.xpose.msra.mxu0 0.0
    %712 = vmatprep.subr.mxu0 0.0
    %713 = vmatpush1.xpose.msra.mxu0 0.0
    %714 = vmatprep.subr.mxu0 0.0
    %715 = vmatpush1.xpose.msra.mxu0 0.0
    %716 = vmatprep.subr.mxu0 0.0
    %717 = vmatpush1.xpose.msra.mxu0 0.0
    %718 = vmatprep.subr.mxu0 0.0
    %719 = vmatpush1.xpose.msra.mxu0 0.0
    %720 = vmatprep.subr.mxu0 0.0
    %721 = vmatpush1.xpose.msra.mxu0 0.0
    %722 = vmatprep.subr.mxu0 0.0
    %723 = vmatpush1.xpose.msra.mxu0 0.0
    %724 = vmatprep.subr.mxu0 0.0
    %725 = vmatpush1.xpose.msra.mxu0 0.0
    %726 = vmatprep.subr.mxu0 0.0
    %727 = vmatpush1.xpose.msra.mxu0 0.0
    %728 = vmatprep.subr.mxu0 0.0
    %729 = vmatpush1.xpose.msra.mxu0 0.0
    %730 = vmatprep.subr.mxu0 %v625
    %731 = vmatpush1.xpose.msra.mxu0 %v623
    %732 = vmatprep.subr.mxu0 0.0
    %733 = vmatpush2.xpose.msra.mxu0 0.0
    %734 = vmatprep.subr.mxu0 0.0
    %735 = vmatpush2.xpose.msra.mxu0 0.0
    %736 = vmatprep.subr.mxu0 0.0
    %737 = vmatpush2.xpose.msra.mxu0 0.0
    %738 = vmatprep.subr.mxu0 0.0
    %739 = vmatpush2.xpose.msra.mxu0 0.0
    %740 = vmatprep.subr.mxu0 0.0
    %741 = vmatpush2.xpose.msra.mxu0 0.0
    %742 = vmatprep.subr.mxu0 0.0
    %743 = vmatpush2.xpose.msra.mxu0 0.0
    %744 = vmatprep.subr.mxu0 0.0
    %745 = vmatpush2.xpose.msra.mxu0 0.0
    %746 = vmatprep.subr.mxu0 0.0
    %747 = vmatpush2.xpose.msra.mxu0 0.0
    %748 = vmatprep.subr.mxu0 0.0
    %749 = vmatpush2.xpose.msra.mxu0 0.0
    %750 = vmatprep.subr.mxu0 0.0
    %751 = vmatpush2.xpose.msra.mxu0 0.0
    %752 = vmatprep.subr.mxu0 0.0
    %753 = vmatpush2.xpose.msra.mxu0 0.0
    %754 = vmatprep.subr.mxu0 0.0
    %755 = vmatpush2.xpose.msra.mxu0 0.0
    %756 = vmatprep.subr.mxu0 0.0
    %757 = vmatpush2.xpose.msra.mxu0 0.0
    %758 = vmatprep.subr.mxu0 0.0
    %759 = vmatpush2.xpose.msra.mxu0 0.0
    %760 = vmatprep.subr.mxu0 0.0
    %761 = vmatpush2.xpose.msra.mxu0 0.0
    %762 = vmatprep.subr.mxu0 0.0
    %763 = vmatpush2.xpose.msra.mxu0 0.0
    %764 = vmatprep.mubr.f32.mxu0 %v625
    %765 = vmatmul.mubr.f32.gmra.mxu0 %v623
    %v766 = vpop.f32.mrf.mxu0
    %v767 = vadd.f32 %v697, %v766
    %v768 = vpop.f32.mrf.mxu0
    %769 = vdwg.mxu0
    %v770 = vadd.f32 %v607, %v767
    %771 = vst.msk [vmem:[#allocation3] sm:$0x3] %vm527, %v770
    // Predicated region
    $region22: #{tpu_custom_call.1} parent=1 // pred_check
      %p772 = pneg %p36
    $region23: #{tpu_custom_call.1} parent=1 // pred_check_branch
      %774 = sbr.rel (%p772) target = $region25
    $region24: #{tpu_custom_call.1} parent=1 // pred_region
      %v775 = vld [vmem:[#allocation2] sm:$0x3]
      %v776 = vld [vmem:[#allocation3] sm:$0x3]
      %v777 = vlaneseq
      %v778 = vshrl.u32 %v777, 7
      %v779 = vlaneseq
      %v780 = vand.u32 %v779, 127
      %vm781 = vcmp.eq.s32.totalorder %v778, %v780
      %v782 = vsel %vm781, 1, 0
      %v783 = vcvt.s32.f32 %v782
      %v784 = vmul.f32 %v775, %v783
      %v785 = vsel %vm527, %v784, 0.0
      %786 = vadd.xlane.f32.xlu0 %v785
      %v787 = vpop.xlane.xlu0 %786
      %v788 = vrot.slane %v785, 4
      %v789 = vadd.f32 %v785, %v788
      %v790 = vrot.slane %v789, 2
      %v791 = vadd.f32 %v789, %v790
      %v792 = vrot.slane %v791, 1
      %v793 = vadd.f32 %v791, %v792
      %v794 = vmul.f32 %v776, %v783
      %v795 = vsel %vm527, %v794, 0.0
      %796 = vadd.xlane.f32.xlu0 %v795
      %v797 = vpop.xlane.xlu0 %796
      %v798 = vrot.slane %v795, 4
      %v799 = vadd.f32 %v795, %v798
      %v800 = vrot.slane %v799, 2
      %v801 = vadd.f32 %v799, %v800
      %v802 = vrot.slane %v801, 1
      %v803 = vadd.f32 %v801, %v802
      %v804 = vrsqrt.pop %v787
      %v805 = vmul.f32 %v787, %v804
      %vm806 = vcmp.eq.f32.partialorder %v787, inf
      %v807 = vsel %vm806, %v787, %v805
      %vm808 = vcmp.eq.f32.partialorder %v787, 0.0
      %v809 = vand.u32 %v787, 2147483648
      %v810 = vsel %vm808, %v809, %v807
      %v811 = vadd.f32 %v810, 1e-06
      %v812 = vrsqrt.pop %v793
      %v813 = vmul.f32 %v793, %v812
      %vm814 = vcmp.eq.f32.partialorder %v793, inf
      %v815 = vsel %vm814, %v793, %v813
      %vm816 = vcmp.eq.f32.partialorder %v793, 0.0
      %v817 = vand.u32 %v793, 2147483648
      %v818 = vsel %vm816, %v817, %v815
      %v819 = vadd.f32 %v818, 1e-06
      %v820 = vmul.f32 %v811, %v819
      %v821 = vrsqrt.pop %v797
      %v822 = vmul.f32 %v797, %v821
      %vm823 = vcmp.eq.f32.partialorder %v797, inf
      %v824 = vsel %vm823, %v797, %v822
      %vm825 = vcmp.eq.f32.partialorder %v797, 0.0
      %v826 = vand.u32 %v797, 2147483648
      %v827 = vsel %vm825, %v826, %v824
      %v828 = vadd.f32 %v827, 1e-06
      %v829 = vrsqrt.pop %v803
      %v830 = vmul.f32 %v803, %v829
      %vm831 = vcmp.eq.f32.partialorder %v803, inf
      %v832 = vsel %vm831, %v803, %v830
      %vm833 = vcmp.eq.f32.partialorder %v803, 0.0
      %v834 = vand.u32 %v803, 2147483648
      %v835 = vsel %vm833, %v834, %v832
      %v836 = vadd.f32 %v835, 1e-06
      %v837 = vmul.f32 %v828, %v836
      %v838 = vrcp.pop %v820
      %v839 = vmul.f32 %v775, %v838
      %v840 = vrcp.pop %v837
      %v841 = vmul.f32 %v776, %v840
      %v842 = vmul.f32 %v839, %v841
      %v843 = vsel %vm527, %v842, 0.0
      %844 = vadd.xlane.f32.xlu0 %v843
      %v845 = vpop.xlane.xlu0 %844
      %v846 = vsel %vm89, %v845, 0.0
      %v847 = vrot.slane %v846, 4
      %v848 = vadd.f32 %v846, %v847
      %v849 = vrot.slane %v848, 2
      %v850 = vadd.f32 %v848, %v849
      %v851 = vrot.slane %v850, 1
      %v852 = vadd.f32 %v850, %v851
      %v853 = vmul.f32 %v852, 1.9073486e-06
      %vm854 = vcmask 0
      %855 = vst.msk [vmem:[#allocation9] sm:$0x1] %vm854, %v853
    $region25: #{tpu_custom_call.1} parent=1 // pred_fallthru
      _
    // Predicated region
    $region26: #{tpu_custom_call.1} parent=1 // pred_check
      _
    $region27: #{tpu_custom_call.1} parent=1 // pred_check_branch
      %857 = sbr.rel (0) target = $region29
    $region28: #{tpu_custom_call.1} parent=1 // pred_region
      %s859 = ssub.s32 16, 16
      %860 = vsyncadd [#allocation6], %s859
      %s862 = sshll.u32 [#allocation9], 4
      %s863 = int_to_ptr.vmem [resolvable:$true] %s862
      %865 = dma.vmem_to_hbm [thread:$0]  %s863, 16, %s2, [#allocation6]
    $region29: #{tpu_custom_call.1} parent=1 // pred_fallthru
      _
    // Predicated region
    $region30: #{tpu_custom_call.1} parent=1 // pred_check
      _
    $region31: #{tpu_custom_call.1} parent=1 // pred_check_branch
      %867 = sbr.rel (0) target = $region33
    $region32: #{tpu_custom_call.1} parent=1 // pred_region
      %868 = dma.done [#allocation6], 16
    $region33: #{tpu_custom_call.1} parent=1 // pred_fallthru
      _
    %869 = vsyncpa [#allocation5], 1
    %870 = vsyncpa [#allocation8], 1
    %871 = vsyncpa [#allocation6], 1

</llo_original>
